<compile_context>
chip_gen: v7x
topology: tpu7x:2x2x1
jax: 0.10.0
libtpu: 0.0.40
codegen_flags: <defaults>
</compile_context>

<pallas_src>
import functools
import math

import jax
import jax.numpy as jnp
from jax import lax
from jax.experimental import pallas as pl
from jax.experimental.pallas import tpu as pltpu

LN_EPS = 1e-5
GELU_C = math.sqrt(2.0 / math.pi)

_TM_CANDIDATES = (1024, 512, 256, 128, 64, 32, 16, 8)


def _round_up(a, b):
    return (a + b - 1) // b * b


def _new_gelu(x):
    # 0.5 * x * (1 + tanh(sqrt(2/pi) * (x + 0.044715 * x^3)))
    return 0.5 * x * (1.0 + jnp.tanh(GELU_C * (x + 0.044715 * (x * x * x))))


def _layernorm(x, gamma, beta):
    # Single-pass LN: one reduction pass gives E[x] and E[x^2]; var = E[x^2]-mu^2.
    mu = jnp.mean(x, axis=-1, keepdims=True)
    ex2 = jnp.mean(x * x, axis=-1, keepdims=True)
    var = jnp.maximum(ex2 - mu * mu, 0.0)
    return (x - mu) * lax.rsqrt(var + LN_EPS) * gamma + beta


# --------------------------------------------------------------------------
# Kernels
# --------------------------------------------------------------------------
def _fused_block_kernel(x_ref, ln1_g_ref, ln1_b_ref,
                        na_w1_ref, na_b1_ref, na_w2_ref, na_b2_ref,
                        ln2_g_ref, ln2_b_ref,
                        mlp_w1_ref, mlp_b1_ref, mlp_w2_ref, mlp_b2_ref,
                        o_ref, *, matmul_dtype, gelu_dtype):
    """Weight-resident path: full block for one (tm, C) row tile."""
    x = x_ref[...].astype(jnp.float32)

    # ---- x = x + NoAttention(ln_1(x)) ----
    h = _layernorm(x, ln1_g_ref[...], ln1_b_ref[...]).astype(matmul_dtype)
    a = jnp.dot(h, na_w1_ref[...], preferred_element_type=jnp.float32) + na_b1_ref[...]
    a = _new_gelu(a.astype(gelu_dtype)).astype(matmul_dtype)
    a = jnp.dot(a, na_w2_ref[...], preferred_element_type=jnp.float32) + na_b2_ref[...]
    x = x + a  # dropout == identity

    # ---- x = x + MLP(ln_2(x)) ----
    h = _layernorm(x, ln2_g_ref[...], ln2_b_ref[...]).astype(matmul_dtype)
    m = jnp.dot(h, mlp_w1_ref[...], preferred_element_type=jnp.float32) + mlp_b1_ref[...]
    m = _new_gelu(m.astype(gelu_dtype)).astype(matmul_dtype)
    m = jnp.dot(m, mlp_w2_ref[...], preferred_element_type=jnp.float32) + mlp_b2_ref[...]
    x = x + m

    o_ref[...] = x.astype(o_ref.dtype)


def _branch_kernel(x_ref, g_ref, b_ref, w1_ref, b1_ref, w2_ref, b2_ref,
                   o_ref, h_ref, acc_ref, *, matmul_dtype, gelu_dtype):
    """Weight-streaming path: out = x + gelu(ln(x) @ W1 + b1) @ W2 + b2.

    Grid = (row_tiles, hidden_chunks); W1/W2/b1 are streamed per hidden chunk
    and the partial products are accumulated into acc_ref.
    """
    k = pl.program_id(1)

    @pl.when(k == 0)
    def _():
        x = x_ref[...].astype(jnp.float32)
        h_ref[...] = _layernorm(x, g_ref[...], b_ref[...]).astype(matmul_dtype)
        acc_ref[...] = jnp.zeros_like(acc_ref)

    a = jnp.dot(h_ref[...], w1_ref[...], preferred_element_type=jnp.float32) + b1_ref[...]
    a = _new_gelu(a.astype(gelu_dtype)).astype(matmul_dtype)
    acc_ref[...] += jnp.dot(a, w2_ref[...], preferred_element_type=jnp.float32)

    @pl.when(k == pl.num_programs(1) - 1)
    def _():
        out = x_ref[...].astype(jnp.float32) + acc_ref[...] + b2_ref[...]
        o_ref[...] = out.astype(o_ref.dtype)


# --------------------------------------------------------------------------
# VMEM sizing / tile selection
# --------------------------------------------------------------------------
def _vmem_capacity_bytes():
    try:
        return int(pltpu.get_tpu_info().vmem_capacity_bytes)
    except Exception:
        return 64 * 1024 * 1024  # conservative (v7x per-TC)


def _resident_need_bytes(tm, C, wsz, gsz, osz):
    weights = 14 * C * C * wsz                      # single resident copy
    small = 16 * C * 4                              # biases + LN params
    io = 2 * tm * C * 4 + 2 * tm * C * osz          # double-buffered x in / out
    hid = 4 * C                                     # widest hidden activation
    inter = tm * (C * 4 + C * wsz + hid * 4 + hid * max(gsz, wsz) + C * 4)
    return weights + small + io + inter


def _streaming_need_bytes(tm, th, C, wsz, gsz, osz):
    weights = 2 * wsz * (2 * C * th + th)           # double-buffered W1/W2/b1 chunks
    small = 8 * C * 4
    io = 2 * tm * C * 4 + 2 * tm * C * osz
    scratch = tm * C * wsz + tm * C * 4             # ln(x) cache + f32 accumulator
    inter = tm * (th * 4 + th * max(gsz, wsz) + C * 4)
    return weights + small + io + scratch + inter


def _pick_tm(M, need_fn, budget):
    # Keep >= ~4 row tiles so v7x's two TensorCores both get work.
    cap = max(8, _round_up(pl.cdiv(M, 4), 8))
    for tm in _TM_CANDIDATES:
        if tm > cap:
            continue
        if need_fn(tm) <= budget:
            return tm
    return None


def _pick_th(H, target=512):
    for th in (target, 384, 256, 128):   # all multiples of 128 (lane alignment)
        if th <= H and H % th == 0:
            return th
    return H


# --------------------------------------------------------------------------
# pallas_call wrappers
# --------------------------------------------------------------------------
def _fused_call(x2d, args, *, tm, matmul_dtype, gelu_dtype, vmem_limit):
    M, C = x2d.shape
    wsz = jnp.dtype(matmul_dtype).itemsize
    full_vmem = pl.BlockSpec(memory_space=pltpu.MemorySpace.VMEM)
    cost = pl.CostEstimate(
        flops=int(2 * M * 14 * C * C),
        transcendentals=int(M * 7 * C),
        bytes_accessed=int(2 * M * C * 4 + 14 * C * C * wsz + 16 * C * 4))
    return pl.pallas_call(
        functools.partial(_fused_block_kernel,
                          matmul_dtype=matmul_dtype, gelu_dtype=gelu_dtype),
        out_shape=jax.ShapeDtypeStruct((M, C), x2d.dtype),
        grid_spec=pltpu.PrefetchScalarGridSpec(
            num_scalar_prefetch=0,
            grid=(pl.cdiv(M, tm),),
            in_specs=[pl.BlockSpec((tm, C), lambda i: (i, 0))] + [full_vmem] * 12,
            out_specs=pl.BlockSpec((tm, C), lambda i: (i, 0)),
        ),
        compiler_params=pltpu.CompilerParams(
            dimension_semantics=("parallel",),
            vmem_limit_bytes=vmem_limit),
        cost_estimate=cost,
    )(x2d, *args)


def _branch_call(x2d, g, b, w1, b1, w2, b2, *, tm, th,
                 matmul_dtype, gelu_dtype, vmem_limit):
    M, C = x2d.shape
    H = w1.shape[1]
    assert H % th == 0, (H, th)
    wsz = jnp.dtype(matmul_dtype).itemsize
    n_row = pl.cdiv(M, tm)
    full_vmem = pl.BlockSpec(memory_space=pltpu.MemorySpace.VMEM)
    cost = pl.CostEstimate(
        flops=int(2 * M * 2 * C * H),
        transcendentals=int(M * H),
        bytes_accessed=int(2 * M * C * 4 + n_row * (2 * C * H + H) * wsz))
    return pl.pallas_call(
        functools.partial(_branch_kernel,
                          matmul_dtype=matmul_dtype, gelu_dtype=gelu_dtype),
        out_shape=jax.ShapeDtypeStruct((M, C), x2d.dtype),
        grid_spec=pltpu.PrefetchScalarGridSpec(
            num_scalar_prefetch=0,
            grid=(n_row, H // th),
            in_specs=[
                pl.BlockSpec((tm, C), lambda i, k: (i, 0)),    # x (fetched once per row tile)
                full_vmem,                                     # LN gamma
                full_vmem,                                     # LN beta
                pl.BlockSpec((C, th), lambda i, k: (0, k)),    # W1 column chunk
                pl.BlockSpec((1, th), lambda i, k: (0, k)),    # b1 chunk
                pl.BlockSpec((th, C), lambda i, k: (k, 0)),    # W2 row chunk
                full_vmem,                                     # b2
            ],
            out_specs=pl.BlockSpec((tm, C), lambda i, k: (i, 0)),
            scratch_shapes=[pltpu.VMEM((tm, C), matmul_dtype),   # cached ln(x)
                            pltpu.VMEM((tm, C), jnp.float32)],   # accumulator
        ),
        compiler_params=pltpu.CompilerParams(
            dimension_semantics=("parallel", "arbitrary"),
            vmem_limit_bytes=vmem_limit),
        cost_estimate=cost,
    )(x2d, g, b, w1, b1, w2, b2)


# --------------------------------------------------------------------------
# Public entry point
# --------------------------------------------------------------------------
@functools.partial(jax.jit, static_argnames=("tm", "th", "matmul_dtype",
                                             "gelu_dtype", "force_streaming"))
def baseline_block(x, params, *, tm=None, th=None,
                   matmul_dtype=jnp.bfloat16, gelu_dtype=None,
                   force_streaming=False):
    """BaselineBlock forward. x: (B, T, C) float32; params: see init_params.

    matmul_dtype: dtype of MXU inputs (bf16 default; jnp.float32 = exact).
    gelu_dtype:   dtype the GELU/elementwise hidden math runs in. Defaults to
                  matmul_dtype (bf16 on v6e/v7x). On v5e pass jnp.float32
                  (no bf16 VPU/EUP there).
    """
    B, T, C = x.shape
    M = B * T
    x2d = x.reshape(M, C)

    wdt = jnp.dtype(matmul_dtype)
    gdt = jnp.dtype(matmul_dtype if gelu_dtype is None else gelu_dtype)
    osz = jnp.dtype(x.dtype).itemsize

    # No-op if params were pre-cast once with prepare_params().
    na_w1 = params["na_w1"].astype(wdt)
    na_w2 = params["na_w2"].astype(wdt)
    mlp_w1 = params["mlp_w1"].astype(wdt)
    mlp_w2 = params["mlp_w2"].astype(wdt)

    budget = int(_vmem_capacity_bytes() * 0.85)   # ~15% headroom for Mosaic scratch

    use_streaming = bool(force_streaming)
    tm_sel = tm
    if not use_streaming:
        need = lambda t: _resident_need_bytes(t, C, wdt.itemsize, gdt.itemsize, osz)
        if tm_sel is None:
            tm_sel = _pick_tm(M, need, budget)
        if tm_sel is None:
            use_streaming = True   # resident weights don't fit VMEM: stream them

    if not use_streaming:
        vmem_limit = int(min(budget, max(need(tm_sel) * 5 // 4, 32 * 1024 * 1024)))
        out2d = _fused_call(
            x2d,
            (params["ln1_g"], params["ln1_b"],
             na_w1, params["na_b1"], na_w2, params["na_b2"],
             params["ln2_g"], params["ln2_b"],
             mlp_w1, params["mlp_b1"], mlp_w2, params["mlp_b2"]),
            tm=tm_sel, matmul_dtype=wdt, gelu_dtype=gdt, vmem_limit=vmem_limit)
    else:
        th1 = th if th is not None else _pick_th(3 * C)
        th2 = th if th is not None else _pick_th(4 * C)
        th_max = max(th1, th2)
        need = lambda t: _streaming_need_bytes(t, th_max, C, wdt.itemsize,
                                               gdt.itemsize, osz)
        if tm_sel is None:
            tm_sel = _pick_tm(M, need, budget) or 8
        vmem_limit = int(min(budget, max(need(tm_sel) * 5 // 4, 32 * 1024 * 1024)))
        x1 = _branch_call(x2d, params["ln1_g"], params["ln1_b"],
                          na_w1, params["na_b1"], na_w2, params["na_b2"],
                          tm=tm_sel, th=th1, matmul_dtype=wdt, gelu_dtype=gdt,
                          vmem_limit=vmem_limit)
        out2d = _branch_call(x1, params["ln2_g"], params["ln2_b"],
                             mlp_w1, params["mlp_b1"], mlp_w2, params["mlp_b2"],
                             tm=tm_sel, th=th2, matmul_dtype=wdt, gelu_dtype=gdt,
                             vmem_limit=vmem_limit)

    return out2d.reshape(B, T, C)


def prepare_params(params, matmul_dtype=jnp.bfloat16):
    """Pre-cast the weight matrices once (avoids per-call cast HBM traffic)."""
    wdt = jnp.dtype(matmul_dtype)
    out = dict(params)
    for k in ("na_w1", "na_w2", "mlp_w1", "mlp_w2"):
        out[k] = params[k].astype(wdt)
    return out


# --------------------------------------------------------------------------
# Synthetic init + pure-JAX reference
# --------------------------------------------------------------------------
def init_params(key, n_embd):
    """Weights stored as (in, out) — transpose of nn.Linear's (out, in)."""
    ks = jax.random.split(key, 4)
    C = n_embd

    def lin(k, fan_in, fan_out):
        bound = 1.0 / math.sqrt(fan_in)
        kw, kb = jax.random.split(k)
        w = jax.random.uniform(kw, (fan_in, fan_out), jnp.float32, -bound, bound)
        b = jax.random.uniform(kb, (1, fan_out), jnp.float32, -bound, bound)
        return w, b

    na_w1, na_b1 = lin(ks[0], C, 3 * C)
    na_w2, na_b2 = lin(ks[1], 3 * C, C)
    mlp_w1, mlp_b1 = lin(ks[2], C, 4 * C)
    mlp_w2, mlp_b2 = lin(ks[3], 4 * C, C)

    return dict(
        ln1_g=jnp.ones((1, C), jnp.float32), ln1_b=jnp.zeros((1, C), jnp.float32),
        na_w1=na_w1, na_b1=na_b1, na_w2=na_w2, na_b2=na_b2,
        ln2_g=jnp.ones((1, C), jnp.float32), ln2_b=jnp.zeros((1, C), jnp.float32),
        mlp_w1=mlp_w1, mlp_b1=mlp_b1, mlp_w2=mlp_w2, mlp_b2=mlp_b2,
    )


def baseline_block_ref(x, p):
    """Pure-JAX f32 reference of the PyTorch forward (dropout = identity)."""
    def ln(h, g, b):
        mu = h.mean(-1, keepdims=True)
        var = ((h - mu) ** 2).mean(-1, keepdims=True)
        return (h - mu) / jnp.sqrt(var + LN_EPS) * g + b

    h = ln(x, p["ln1_g"], p["ln1_b"])
    a = _new_gelu(h @ p["na_w1"] + p["na_b1"]) @ p["na_w2"] + p["na_b2"]
    x = x + a
    h = ln(x, p["ln2_g"], p["ln2_b"])
    m = _new_gelu(h @ p["mlp_w1"] + p["mlp_b1"]) @ p["mlp_w2"] + p["mlp_b2"]
    return x + m


if __name__ == "__main__":
    key = jax.random.PRNGKey(0)
    kx, kp, kx2, kp2 = jax.random.split(key, 4)

    # ---- primary small config: batch=2, seq=8, n_embd=32 ----
    B, T, C = 2, 8, 32
    x = jax.random.normal(kx, (B, T, C), jnp.float32)
    params = init_params(kp, C)
    ref = baseline_block_ref(x, params)

    # Exact-semantics path (f32 matmuls), fused weight-resident kernel.
    out_f32 = jax.block_until_ready(
        baseline_block(x, params, matmul_dtype=jnp.float32))
    assert out_f32.shape == (B, T, C)
    assert jnp.allclose(out_f32, ref, atol=5e-4, rtol=5e-4), \
        float(jnp.abs(out_f32 - ref).max())

    # Performance default: pre-cast bf16 weights, bf16 MXU inputs + bf16 GELU.
    params_bf16 = prepare_params(params, jnp.bfloat16)
    out_bf16 = jax.block_until_ready(baseline_block(x, params_bf16))
    assert out_bf16.shape == (B, T, C)
    assert jnp.allclose(out_bf16, ref, atol=3e-2, rtol=3e-2), \
        float(jnp.abs(out_bf16 - ref).max())

    # Weight-streaming path (the large-C / v7x configuration), validated at a
    # small shape with multiple hidden-dim chunks (3C/th = 3, 4C/th = 4).
    B2, T2, C2 = 2, 16, 128
    x2 = jax.random.normal(kx2, (B2, T2, C2), jnp.float32)
    params2 = init_params(kp2, C2)
    ref2 = baseline_block_ref(x2, params2)
    out_stream = jax.block_until_ready(
        baseline_block(x2, params2, matmul_dtype=jnp.float32,
                       force_streaming=True, th=128))
    assert out_stream.shape == (B2, T2, C2)
    assert jnp.allclose(out_stream, ref2, atol=1e-3, rtol=1e-3), \
        float(jnp.abs(out_stream - ref2).max())

    print("KERNEL_OK")
</pallas_src>

<mosaic_0001>
module attributes {stable_mosaic.version = 11 : i64} {
  func.func @_fused_block_kernel(%arg0: i32, %arg1: memref<8x32xf32, #tpu.memory_space<vmem>>, %arg2: memref<1x32xf32, #tpu.memory_space<vmem>>, %arg3: memref<1x32xf32, #tpu.memory_space<vmem>>, %arg4: memref<32x96xf32, #tpu.memory_space<vmem>>, %arg5: memref<1x96xf32, #tpu.memory_space<vmem>>, %arg6: memref<96x32xf32, #tpu.memory_space<vmem>>, %arg7: memref<1x32xf32, #tpu.memory_space<vmem>>, %arg8: memref<1x32xf32, #tpu.memory_space<vmem>>, %arg9: memref<1x32xf32, #tpu.memory_space<vmem>>, %arg10: memref<32x128xf32, #tpu.memory_space<vmem>>, %arg11: memref<1x128xf32, #tpu.memory_space<vmem>>, %arg12: memref<128x32xf32, #tpu.memory_space<vmem>>, %arg13: memref<1x32xf32, #tpu.memory_space<vmem>>, %arg14: memref<8x32xf32, #tpu.memory_space<vmem>>) attributes {dimension_semantics = [#tpu.dimension_semantics<parallel>], iteration_bounds = array<i64: 2>, scalar_prefetch = 0 : i64, scratch_operands = 0 : i64, tpu.core_type = #tpu.core_type<tc>, window_params = [{transform_indices = @transform_0, window_bounds = array<i64: 8, 32>}, {pipeline_mode = #tpu.pipeline_mode<synchronous>, transform_indices = @transform_1, window_bounds = array<i64: 1, 32>}, {pipeline_mode = #tpu.pipeline_mode<synchronous>, transform_indices = @transform_2, window_bounds = array<i64: 1, 32>}, {pipeline_mode = #tpu.pipeline_mode<synchronous>, transform_indices = @transform_3, window_bounds = array<i64: 32, 96>}, {pipeline_mode = #tpu.pipeline_mode<synchronous>, transform_indices = @transform_4, window_bounds = array<i64: 1, 96>}, {pipeline_mode = #tpu.pipeline_mode<synchronous>, transform_indices = @transform_5, window_bounds = array<i64: 96, 32>}, {pipeline_mode = #tpu.pipeline_mode<synchronous>, transform_indices = @transform_6, window_bounds = array<i64: 1, 32>}, {pipeline_mode = #tpu.pipeline_mode<synchronous>, transform_indices = @transform_7, window_bounds = array<i64: 1, 32>}, {pipeline_mode = #tpu.pipeline_mode<synchronous>, transform_indices = @transform_8, window_bounds = array<i64: 1, 32>}, {pipeline_mode = #tpu.pipeline_mode<synchronous>, transform_indices = @transform_9, window_bounds = array<i64: 32, 128>}, {pipeline_mode = #tpu.pipeline_mode<synchronous>, transform_indices = @transform_10, window_bounds = array<i64: 1, 128>}, {pipeline_mode = #tpu.pipeline_mode<synchronous>, transform_indices = @transform_11, window_bounds = array<i64: 128, 32>}, {pipeline_mode = #tpu.pipeline_mode<synchronous>, transform_indices = @transform_12, window_bounds = array<i64: 1, 32>}, {transform_indices = @transform_13, window_bounds = array<i64: 8, 32>}]} {
    %c0 = arith.constant 0 : index
    %c0_0 = arith.constant 0 : index
    %0 = vector.load %arg1[%c0, %c0_0] : memref<8x32xf32, #tpu.memory_space<vmem>>, vector<8x32xf32>
    %c0_1 = arith.constant 0 : index
    %c0_2 = arith.constant 0 : index
    %1 = vector.load %arg2[%c0_1, %c0_2] : memref<1x32xf32, #tpu.memory_space<vmem>>, vector<1x32xf32>
    %c0_3 = arith.constant 0 : index
    %c0_4 = arith.constant 0 : index
    %2 = vector.load %arg3[%c0_3, %c0_4] : memref<1x32xf32, #tpu.memory_space<vmem>>, vector<1x32xf32>
    %cst = arith.constant dense<0.000000e+00> : vector<8xf32>
    %3 = vector.multi_reduction <add>, %0, %cst [1] : vector<8x32xf32> to vector<8xf32>
    %4 = vector.shape_cast %3 : vector<8xf32> to vector<8x1xf32>
    %cst_5 = arith.constant 3.200000e+01 : f32
    %5 = vector.broadcast %cst_5 : f32 to vector<8x1xf32>
    %6 = arith.divf %4, %5 : vector<8x1xf32>
    %7 = arith.mulf %0, %0 : vector<8x32xf32>
    %cst_6 = arith.constant dense<0.000000e+00> : vector<8xf32>
    %8 = vector.multi_reduction <add>, %7, %cst_6 [1] : vector<8x32xf32> to vector<8xf32>
    %9 = vector.shape_cast %8 : vector<8xf32> to vector<8x1xf32>
    %cst_7 = arith.constant 3.200000e+01 : f32
    %10 = vector.broadcast %cst_7 : f32 to vector<8x1xf32>
    %11 = arith.divf %9, %10 : vector<8x1xf32>
    %12 = arith.mulf %6, %6 : vector<8x1xf32>
    %13 = arith.subf %11, %12 : vector<8x1xf32>
    %cst_8 = arith.constant 0.000000e+00 : f32
    %14 = vector.broadcast %cst_8 : f32 to vector<8x1xf32>
    %15 = arith.maximumf %13, %14 : vector<8x1xf32>
    %16 = vector.broadcast %6 : vector<8x1xf32> to vector<8x32xf32>
    %17 = arith.subf %0, %16 : vector<8x32xf32>
    %cst_9 = arith.constant 9.99999974E-6 : f32
    %18 = vector.broadcast %cst_9 : f32 to vector<8x1xf32>
    %19 = arith.addf %15, %18 : vector<8x1xf32>
    %20 = math.rsqrt %19 : vector<8x1xf32>
    %21 = vector.broadcast %20 : vector<8x1xf32> to vector<8x32xf32>
    %22 = arith.mulf %17, %21 : vector<8x32xf32>
    %23 = vector.broadcast %1 : vector<1x32xf32> to vector<8x32xf32>
    %24 = arith.mulf %22, %23 : vector<8x32xf32>
    %25 = vector.broadcast %2 : vector<1x32xf32> to vector<8x32xf32>
    %26 = arith.addf %24, %25 : vector<8x32xf32>
    %c0_10 = arith.constant 0 : index
    %c0_11 = arith.constant 0 : index
    %27 = vector.load %arg4[%c0_10, %c0_11] : memref<32x96xf32, #tpu.memory_space<vmem>>, vector<32x96xf32>
    %cst_12 = arith.constant dense<0.000000e+00> : vector<8x96xf32>
    %28 = tpu.matmul %26, %27, %cst_12 {dimension_numbers = #tpu.dot_dimension_numbers<[1], [0], [0], [1], [0, 0, 1, 1], [], []>} : vector<8x32xf32>, vector<32x96xf32>, vector<8x96xf32> -> vector<8x96xf32>
    %c0_13 = arith.constant 0 : index
    %c0_14 = arith.constant 0 : index
    %29 = vector.load %arg5[%c0_13, %c0_14] : memref<1x96xf32, #tpu.memory_space<vmem>>, vector<1x96xf32>
    %30 = vector.broadcast %29 : vector<1x96xf32> to vector<8x96xf32>
    %31 = arith.addf %28, %30 : vector<8x96xf32>
    %cst_15 = arith.constant 5.000000e-01 : f32
    %32 = vector.broadcast %cst_15 : f32 to vector<8x96xf32>
    %33 = arith.mulf %32, %31 : vector<8x96xf32>
    %34 = arith.mulf %31, %31 : vector<8x96xf32>
    %35 = arith.mulf %34, %31 : vector<8x96xf32>
    %cst_16 = arith.constant 4.471500e-02 : f32
    %36 = vector.broadcast %cst_16 : f32 to vector<8x96xf32>
    %37 = arith.mulf %36, %35 : vector<8x96xf32>
    %38 = arith.addf %31, %37 : vector<8x96xf32>
    %cst_17 = arith.constant 0.797884583 : f32
    %39 = vector.broadcast %cst_17 : f32 to vector<8x96xf32>
    %40 = arith.mulf %39, %38 : vector<8x96xf32>
    %41 = math.tanh %40 : vector<8x96xf32>
    %cst_18 = arith.constant 1.000000e+00 : f32
    %42 = vector.broadcast %cst_18 : f32 to vector<8x96xf32>
    %43 = arith.addf %42, %41 : vector<8x96xf32>
    %44 = arith.mulf %33, %43 : vector<8x96xf32>
    %c0_19 = arith.constant 0 : index
    %c0_20 = arith.constant 0 : index
    %45 = vector.load %arg6[%c0_19, %c0_20] : memref<96x32xf32, #tpu.memory_space<vmem>>, vector<96x32xf32>
    %cst_21 = arith.constant dense<0.000000e+00> : vector<8x32xf32>
    %46 = tpu.matmul %44, %45, %cst_21 {dimension_numbers = #tpu.dot_dimension_numbers<[1], [0], [0], [1], [0, 0, 1, 1], [], []>} : vector<8x96xf32>, vector<96x32xf32>, vector<8x32xf32> -> vector<8x32xf32>
    %c0_22 = arith.constant 0 : index
    %c0_23 = arith.constant 0 : index
    %47 = vector.load %arg7[%c0_22, %c0_23] : memref<1x32xf32, #tpu.memory_space<vmem>>, vector<1x32xf32>
    %48 = vector.broadcast %47 : vector<1x32xf32> to vector<8x32xf32>
    %49 = arith.addf %46, %48 : vector<8x32xf32>
    %50 = arith.addf %0, %49 : vector<8x32xf32>
    %c0_24 = arith.constant 0 : index
    %c0_25 = arith.constant 0 : index
    %51 = vector.load %arg8[%c0_24, %c0_25] : memref<1x32xf32, #tpu.memory_space<vmem>>, vector<1x32xf32>
    %c0_26 = arith.constant 0 : index
    %c0_27 = arith.constant 0 : index
    %52 = vector.load %arg9[%c0_26, %c0_27] : memref<1x32xf32, #tpu.memory_space<vmem>>, vector<1x32xf32>
    %cst_28 = arith.constant dense<0.000000e+00> : vector<8xf32>
    %53 = vector.multi_reduction <add>, %50, %cst_28 [1] : vector<8x32xf32> to vector<8xf32>
    %54 = vector.shape_cast %53 : vector<8xf32> to vector<8x1xf32>
    %cst_29 = arith.constant 3.200000e+01 : f32
    %55 = vector.broadcast %cst_29 : f32 to vector<8x1xf32>
    %56 = arith.divf %54, %55 : vector<8x1xf32>
    %57 = arith.mulf %50, %50 : vector<8x32xf32>
    %cst_30 = arith.constant dense<0.000000e+00> : vector<8xf32>
    %58 = vector.multi_reduction <add>, %57, %cst_30 [1] : vector<8x32xf32> to vector<8xf32>
    %59 = vector.shape_cast %58 : vector<8xf32> to vector<8x1xf32>
    %cst_31 = arith.constant 3.200000e+01 : f32
    %60 = vector.broadcast %cst_31 : f32 to vector<8x1xf32>
    %61 = arith.divf %59, %60 : vector<8x1xf32>
    %62 = arith.mulf %56, %56 : vector<8x1xf32>
    %63 = arith.subf %61, %62 : vector<8x1xf32>
    %cst_32 = arith.constant 0.000000e+00 : f32
    %64 = vector.broadcast %cst_32 : f32 to vector<8x1xf32>
    %65 = arith.maximumf %63, %64 : vector<8x1xf32>
    %66 = vector.broadcast %56 : vector<8x1xf32> to vector<8x32xf32>
    %67 = arith.subf %50, %66 : vector<8x32xf32>
    %cst_33 = arith.constant 9.99999974E-6 : f32
    %68 = vector.broadcast %cst_33 : f32 to vector<8x1xf32>
    %69 = arith.addf %65, %68 : vector<8x1xf32>
    %70 = math.rsqrt %69 : vector<8x1xf32>
    %71 = vector.broadcast %70 : vector<8x1xf32> to vector<8x32xf32>
    %72 = arith.mulf %67, %71 : vector<8x32xf32>
    %73 = vector.broadcast %51 : vector<1x32xf32> to vector<8x32xf32>
    %74 = arith.mulf %72, %73 : vector<8x32xf32>
    %75 = vector.broadcast %52 : vector<1x32xf32> to vector<8x32xf32>
    %76 = arith.addf %74, %75 : vector<8x32xf32>
    %c0_34 = arith.constant 0 : index
    %c0_35 = arith.constant 0 : index
    %77 = vector.load %arg10[%c0_34, %c0_35] : memref<32x128xf32, #tpu.memory_space<vmem>>, vector<32x128xf32>
    %cst_36 = arith.constant dense<0.000000e+00> : vector<8x128xf32>
    %78 = tpu.matmul %76, %77, %cst_36 {dimension_numbers = #tpu.dot_dimension_numbers<[1], [0], [0], [1], [0, 0, 1, 1], [], []>} : vector<8x32xf32>, vector<32x128xf32>, vector<8x128xf32> -> vector<8x128xf32>
    %c0_37 = arith.constant 0 : index
    %c0_38 = arith.constant 0 : index
    %79 = vector.load %arg11[%c0_37, %c0_38] : memref<1x128xf32, #tpu.memory_space<vmem>>, vector<1x128xf32>
    %80 = vector.broadcast %79 : vector<1x128xf32> to vector<8x128xf32>
    %81 = arith.addf %78, %80 : vector<8x128xf32>
    %cst_39 = arith.constant 5.000000e-01 : f32
    %82 = vector.broadcast %cst_39 : f32 to vector<8x128xf32>
    %83 = arith.mulf %82, %81 : vector<8x128xf32>
    %84 = arith.mulf %81, %81 : vector<8x128xf32>
    %85 = arith.mulf %84, %81 : vector<8x128xf32>
    %cst_40 = arith.constant 4.471500e-02 : f32
    %86 = vector.broadcast %cst_40 : f32 to vector<8x128xf32>
    %87 = arith.mulf %86, %85 : vector<8x128xf32>
    %88 = arith.addf %81, %87 : vector<8x128xf32>
    %cst_41 = arith.constant 0.797884583 : f32
    %89 = vector.broadcast %cst_41 : f32 to vector<8x128xf32>
    %90 = arith.mulf %89, %88 : vector<8x128xf32>
    %91 = math.tanh %90 : vector<8x128xf32>
    %cst_42 = arith.constant 1.000000e+00 : f32
    %92 = vector.broadcast %cst_42 : f32 to vector<8x128xf32>
    %93 = arith.addf %92, %91 : vector<8x128xf32>
    %94 = arith.mulf %83, %93 : vector<8x128xf32>
    %c0_43 = arith.constant 0 : index
    %c0_44 = arith.constant 0 : index
    %95 = vector.load %arg12[%c0_43, %c0_44] : memref<128x32xf32, #tpu.memory_space<vmem>>, vector<128x32xf32>
    %cst_45 = arith.constant dense<0.000000e+00> : vector<8x32xf32>
    %96 = tpu.matmul %94, %95, %cst_45 {dimension_numbers = #tpu.dot_dimension_numbers<[1], [0], [0], [1], [0, 0, 1, 1], [], []>} : vector<8x128xf32>, vector<128x32xf32>, vector<8x32xf32> -> vector<8x32xf32>
    %c0_46 = arith.constant 0 : index
    %c0_47 = arith.constant 0 : index
    %97 = vector.load %arg13[%c0_46, %c0_47] : memref<1x32xf32, #tpu.memory_space<vmem>>, vector<1x32xf32>
    %98 = vector.broadcast %97 : vector<1x32xf32> to vector<8x32xf32>
    %99 = arith.addf %96, %98 : vector<8x32xf32>
    %100 = arith.addf %50, %99 : vector<8x32xf32>
    %c0_48 = arith.constant 0 : index
    %c0_49 = arith.constant 0 : index
    %101 = vector.load %arg14[%c0_48, %c0_49] : memref<8x32xf32, #tpu.memory_space<vmem>>, vector<8x32xf32>
    tpu.vector_store %arg14[%c0_48, %c0_49], %100 {strides = array<i32>} : memref<8x32xf32, #tpu.memory_space<vmem>>, vector<8x32xf32>,
    return
  }
  func.func @transform_0(%arg0: i32) -> (i32, i32) {
    %c0_i32 = arith.constant 0 : i32
    %c0_i32_0 = arith.constant 0 : i32
    return %arg0, %c0_i32 : i32, i32
  }
  func.func @transform_1(%arg0: i32) -> (i32, i32) {
    %c0_i32 = arith.constant 0 : i32
    %c0_i32_0 = arith.constant 0 : i32
    %c0_i32_1 = arith.constant 0 : i32
    return %c0_i32, %c0_i32_0 : i32, i32
  }
  func.func @transform_2(%arg0: i32) -> (i32, i32) {
    %c0_i32 = arith.constant 0 : i32
    %c0_i32_0 = arith.constant 0 : i32
    %c0_i32_1 = arith.constant 0 : i32
    return %c0_i32, %c0_i32_0 : i32, i32
  }
  func.func @transform_3(%arg0: i32) -> (i32, i32) {
    %c0_i32 = arith.constant 0 : i32
    %c0_i32_0 = arith.constant 0 : i32
    %c0_i32_1 = arith.constant 0 : i32
    return %c0_i32, %c0_i32_0 : i32, i32
  }
  func.func @transform_4(%arg0: i32) -> (i32, i32) {
    %c0_i32 = arith.constant 0 : i32
    %c0_i32_0 = arith.constant 0 : i32
    %c0_i32_1 = arith.constant 0 : i32
    return %c0_i32, %c0_i32_0 : i32, i32
  }
  func.func @transform_5(%arg0: i32) -> (i32, i32) {
    %c0_i32 = arith.constant 0 : i32
    %c0_i32_0 = arith.constant 0 : i32
    %c0_i32_1 = arith.constant 0 : i32
    return %c0_i32, %c0_i32_0 : i32, i32
  }
  func.func @transform_6(%arg0: i32) -> (i32, i32) {
    %c0_i32 = arith.constant 0 : i32
    %c0_i32_0 = arith.constant 0 : i32
    %c0_i32_1 = arith.constant 0 : i32
    return %c0_i32, %c0_i32_0 : i32, i32
  }
  func.func @transform_7(%arg0: i32) -> (i32, i32) {
    %c0_i32 = arith.constant 0 : i32
    %c0_i32_0 = arith.constant 0 : i32
    %c0_i32_1 = arith.constant 0 : i32
    return %c0_i32, %c0_i32_0 : i32, i32
  }
  func.func @transform_8(%arg0: i32) -> (i32, i32) {
    %c0_i32 = arith.constant 0 : i32
    %c0_i32_0 = arith.constant 0 : i32
    %c0_i32_1 = arith.constant 0 : i32
    return %c0_i32, %c0_i32_0 : i32, i32
  }
  func.func @transform_9(%arg0: i32) -> (i32, i32) {
    %c0_i32 = arith.constant 0 : i32
    %c0_i32_0 = arith.constant 0 : i32
    %c0_i32_1 = arith.constant 0 : i32
    return %c0_i32, %c0_i32_0 : i32, i32
  }
  func.func @transform_10(%arg0: i32) -> (i32, i32) {
    %c0_i32 = arith.constant 0 : i32
    %c0_i32_0 = arith.constant 0 : i32
    %c0_i32_1 = arith.constant 0 : i32
    return %c0_i32, %c0_i32_0 : i32, i32
  }
  func.func @transform_11(%arg0: i32) -> (i32, i32) {
    %c0_i32 = arith.constant 0 : i32
    %c0_i32_0 = arith.constant 0 : i32
    %c0_i32_1 = arith.constant 0 : i32
    return %c0_i32, %c0_i32_0 : i32, i32
  }
  func.func @transform_12(%arg0: i32) -> (i32, i32) {
    %c0_i32 = arith.constant 0 : i32
    %c0_i32_0 = arith.constant 0 : i32
    %c0_i32_1 = arith.constant 0 : i32
    return %c0_i32, %c0_i32_0 : i32, i32
  }
  func.func @transform_13(%arg0: i32) -> (i32, i32) {
    %c0_i32 = arith.constant 0 : i32
    %c0_i32_0 = arith.constant 0 : i32
    return %arg0, %c0_i32 : i32, i32
  }
}

</mosaic_0001>

<llo_original>
// kernel: baseline_block.1
$region0: #{baseline_block.1}
  #allocation0 [shape = 'u32[]', space=smem, size = 0x4, offset = 0x4, fixed_abs, tag = 'smem constant byte address 0x4 - core index']
  #allocation1 [shape = 'u32[144,128]{1,0:T(1,128)}', space=vmem, size = 0x12000, scoped, tag = 'internal scratch']
  %s0 = inlined_call_operand.vmem [shape: f32[16,32], index: 0, kind: input, shape index: {}]
  %s1 = inlined_call_operand.vmem [shape: f32[1,32], index: 1, kind: input, shape index: {}]
  %s2 = inlined_call_operand.vmem [shape: f32[1,32], index: 2, kind: input, shape index: {}]
  %s3 = inlined_call_operand.vmem [shape: f32[32,96], index: 3, kind: input, shape index: {}]
  %s4 = inlined_call_operand.vmem [shape: f32[1,96], index: 4, kind: input, shape index: {}]
  %s5 = inlined_call_operand.vmem [shape: f32[96,32], index: 5, kind: input, shape index: {}]
  %s6 = inlined_call_operand.vmem [shape: f32[1,32], index: 6, kind: input, shape index: {}]
  %s7 = inlined_call_operand.vmem [shape: f32[1,32], index: 7, kind: input, shape index: {}]
  %s8 = inlined_call_operand.vmem [shape: f32[1,32], index: 8, kind: input, shape index: {}]
  %s9 = inlined_call_operand.vmem [shape: f32[32,128], index: 9, kind: input, shape index: {}]
  %s10 = inlined_call_operand.vmem [shape: f32[1,128], index: 10, kind: input, shape index: {}]
  %s11 = inlined_call_operand.vmem [shape: f32[128,32], index: 11, kind: input, shape index: {}]
  %s12 = inlined_call_operand.vmem [shape: f32[1,32], index: 12, kind: input, shape index: {}]
  %s13 = inlined_call_operand.hbm [shape: f32[16,32], index: 13, kind: output, shape index: {}]
  %s14 = sld [smem:[#allocation0]]
  $region85: #{baseline_block.1} parent=0
    _
  %s16 = ssub.s32 1, %s14
  %s17 = scalar_select 0, %s16, %s14
  $region1: #{baseline_block.1} parent=0
    #allocation2 [shape = 'u8[8192]{0}', space=vmem, size = 0x2000, scoped, tag = 'output window, operand 0']
    #allocation3 [shape = 's32[2]{0}', space=sflag, size = 0x8, scoped, tag = 'scoped memory for baseline_block.1']
    %18 = vsyncpa [#allocation3], 0
    %s19 = scalar_lea.sflag [#allocation3], 1
    %20 = vsyncpa %s19, 0
    loop: start=0, step=1, limit=4
    $region2: #{baseline_block.1} parent=1 // loop_pre_header
      _
    $region3: #{baseline_block.1} parent=1 // loop_header
      %s22 = sphi 0, %s26
      %p23 = scmp.ge.s32.totalorder %s22, 4
      %s32 = sphi 0, %s34
      %s35 = sphi 0, %s32
      %s36 = sphi 0, %s35
      %s52 = sphi 0, %s36
      %s56 = sphi 0, %s56
      %s58 = sphi 0, %s56
      %s59 = sphi 0, %s58
      %s73 = sphi 0, %s59
      %s77 = sphi 0, %s77
      %s79 = sphi 0, %s77
      %s80 = sphi 0, %s79
      %s94 = sphi 0, %s80
      %s98 = sphi 0, %s98
      %s100 = sphi 0, %s98
      %s101 = sphi 0, %s100
      %s115 = sphi 0, %s101
      %s119 = sphi 0, %s119
      %s121 = sphi 0, %s119
      %s122 = sphi 0, %s121
      %s136 = sphi 0, %s122
      %s140 = sphi 0, %s140
      %s142 = sphi 0, %s140
      %s143 = sphi 0, %s142
      %s157 = sphi 0, %s143
      %s161 = sphi 0, %s161
      %s163 = sphi 0, %s161
      %s164 = sphi 0, %s163
      %s178 = sphi 0, %s164
      %s182 = sphi 0, %s182
      %s184 = sphi 0, %s182
      %s185 = sphi 0, %s184
      %s199 = sphi 0, %s185
      %s203 = sphi 0, %s203
      %s205 = sphi 0, %s203
      %s206 = sphi 0, %s205
      %s220 = sphi 0, %s206
      %s224 = sphi 0, %s224
      %s226 = sphi 0, %s224
      %s227 = sphi 0, %s226
      %s241 = sphi 0, %s227
      %s245 = sphi 0, %s245
      %s247 = sphi 0, %s245
      %s248 = sphi 0, %s247
      %s262 = sphi 0, %s248
      %s266 = sphi 0, %s266
      %s268 = sphi 0, %s266
      %s269 = sphi 0, %s268
      %s283 = sphi 0, %s269
      %s287 = sphi 0, %s287
      %s289 = sphi 0, %s287
      %s290 = sphi 0, %s289
      %s304 = sphi 0, %s290
      %s310 = sphi 0, %s312
      %s313 = sphi 0, %s310
      %s314 = sphi 0, %s313
      %s330 = sphi 0, %s314
    $region4: #{baseline_block.1} parent=1 // loop_header_branch
      %25 = sbr.rel (%p23) target = $region8
    $region5: #{baseline_block.1} parent=1 // loop_body
      %s27 = ssub.s32 %s22, 1
      %s28 = ssub.s32 %s22, 2
      %s29 = sadd.s32 %s22, 1
      %s30 = ssub.s32 %s22, %s29
      %p31 = scmp.eq.s32.totalorder %s30, 0
      %s33 = sadd.s32 %s32, 1
      %s34 = scalar_select %p31, %s32, %s33
      %p37 = pneg %p31
      %p38 = scmp.eq.s32.totalorder %s22, 1
      %p39 = por %p37, %p38
      %p40 = scmp.ne.s32.totalorder %s32, %s35
      %p41 = scmp.eq.s32.totalorder %s22, 0
      %p42 = por %p40, %p41
      %p43 = scmp.ne.s32.totalorder %s32, %s35
      %p44 = scmp.eq.s32.totalorder %s27, 1
      %p45 = por %p43, %p44
      %p46 = scmp.ne.s32.totalorder %s35, %s36
      %p47 = scmp.eq.s32.totalorder %s27, 0
      %p48 = por %p46, %p47
      %p49 = scmp.ne.s32.totalorder %s35, %s36
      %p50 = scmp.eq.s32.totalorder %s28, 1
      %p51 = por %p49, %p50
      %p53 = scmp.ne.s32.totalorder %s36, %s52
      %p54 = scmp.eq.s32.totalorder %s28, 0
      %p55 = por %p53, %p54
      %s57 = sadd.s32 %s56, 1
      %p60 = scmp.eq.s32.totalorder %s22, 1
      %p61 = scmp.ne.s32.totalorder %s56, %s58
      %p62 = scmp.eq.s32.totalorder %s22, 0
      %p63 = por %p61, %p62
      %p64 = scmp.ne.s32.totalorder %s56, %s58
      %p65 = scmp.eq.s32.totalorder %s27, 1
      %p66 = por %p64, %p65
      %p67 = scmp.ne.s32.totalorder %s58, %s59
      %p68 = scmp.eq.s32.totalorder %s27, 0
      %p69 = por %p67, %p68
      %p70 = scmp.ne.s32.totalorder %s58, %s59
      %p71 = scmp.eq.s32.totalorder %s28, 1
      %p72 = por %p70, %p71
      %p74 = scmp.ne.s32.totalorder %s59, %s73
      %p75 = scmp.eq.s32.totalorder %s28, 0
      %p76 = por %p74, %p75
      %s78 = sadd.s32 %s77, 1
      %p81 = scmp.eq.s32.totalorder %s22, 1
      %p82 = scmp.ne.s32.totalorder %s77, %s79
      %p83 = scmp.eq.s32.totalorder %s22, 0
      %p84 = por %p82, %p83
      %p85 = scmp.ne.s32.totalorder %s77, %s79
      %p86 = scmp.eq.s32.totalorder %s27, 1
      %p87 = por %p85, %p86
      %p88 = scmp.ne.s32.totalorder %s79, %s80
      %p89 = scmp.eq.s32.totalorder %s27, 0
      %p90 = por %p88, %p89
      %p91 = scmp.ne.s32.totalorder %s79, %s80
      %p92 = scmp.eq.s32.totalorder %s28, 1
      %p93 = por %p91, %p92
      %p95 = scmp.ne.s32.totalorder %s80, %s94
      %p96 = scmp.eq.s32.totalorder %s28, 0
      %p97 = por %p95, %p96
      %s99 = sadd.s32 %s98, 1
      %p102 = scmp.eq.s32.totalorder %s22, 1
      %p103 = scmp.ne.s32.totalorder %s98, %s100
      %p104 = scmp.eq.s32.totalorder %s22, 0
      %p105 = por %p103, %p104
      %p106 = scmp.ne.s32.totalorder %s98, %s100
      %p107 = scmp.eq.s32.totalorder %s27, 1
      %p108 = por %p106, %p107
      %p109 = scmp.ne.s32.totalorder %s100, %s101
      %p110 = scmp.eq.s32.totalorder %s27, 0
      %p111 = por %p109, %p110
      %p112 = scmp.ne.s32.totalorder %s100, %s101
      %p113 = scmp.eq.s32.totalorder %s28, 1
      %p114 = por %p112, %p113
      %p116 = scmp.ne.s32.totalorder %s101, %s115
      %p117 = scmp.eq.s32.totalorder %s28, 0
      %p118 = por %p116, %p117
      %s120 = sadd.s32 %s119, 1
      %p123 = scmp.eq.s32.totalorder %s22, 1
      %p124 = scmp.ne.s32.totalorder %s119, %s121
      %p125 = scmp.eq.s32.totalorder %s22, 0
      %p126 = por %p124, %p125
      %p127 = scmp.ne.s32.totalorder %s119, %s121
      %p128 = scmp.eq.s32.totalorder %s27, 1
      %p129 = por %p127, %p128
      %p130 = scmp.ne.s32.totalorder %s121, %s122
      %p131 = scmp.eq.s32.totalorder %s27, 0
      %p132 = por %p130, %p131
      %p133 = scmp.ne.s32.totalorder %s121, %s122
      %p134 = scmp.eq.s32.totalorder %s28, 1
      %p135 = por %p133, %p134
      %p137 = scmp.ne.s32.totalorder %s122, %s136
      %p138 = scmp.eq.s32.totalorder %s28, 0
      %p139 = por %p137, %p138
      %s141 = sadd.s32 %s140, 1
      %p144 = scmp.eq.s32.totalorder %s22, 1
      %p145 = scmp.ne.s32.totalorder %s140, %s142
      %p146 = scmp.eq.s32.totalorder %s22, 0
      %p147 = por %p145, %p146
      %p148 = scmp.ne.s32.totalorder %s140, %s142
      %p149 = scmp.eq.s32.totalorder %s27, 1
      %p150 = por %p148, %p149
      %p151 = scmp.ne.s32.totalorder %s142, %s143
      %p152 = scmp.eq.s32.totalorder %s27, 0
      %p153 = por %p151, %p152
      %p154 = scmp.ne.s32.totalorder %s142, %s143
      %p155 = scmp.eq.s32.totalorder %s28, 1
      %p156 = por %p154, %p155
      %p158 = scmp.ne.s32.totalorder %s143, %s157
      %p159 = scmp.eq.s32.totalorder %s28, 0
      %p160 = por %p158, %p159
      %s162 = sadd.s32 %s161, 1
      %p165 = scmp.eq.s32.totalorder %s22, 1
      %p166 = scmp.ne.s32.totalorder %s161, %s163
      %p167 = scmp.eq.s32.totalorder %s22, 0
      %p168 = por %p166, %p167
      %p169 = scmp.ne.s32.totalorder %s161, %s163
      %p170 = scmp.eq.s32.totalorder %s27, 1
      %p171 = por %p169, %p170
      %p172 = scmp.ne.s32.totalorder %s163, %s164
      %p173 = scmp.eq.s32.totalorder %s27, 0
      %p174 = por %p172, %p173
      %p175 = scmp.ne.s32.totalorder %s163, %s164
      %p176 = scmp.eq.s32.totalorder %s28, 1
      %p177 = por %p175, %p176
      %p179 = scmp.ne.s32.totalorder %s164, %s178
      %p180 = scmp.eq.s32.totalorder %s28, 0
      %p181 = por %p179, %p180
      %s183 = sadd.s32 %s182, 1
      %p186 = scmp.eq.s32.totalorder %s22, 1
      %p187 = scmp.ne.s32.totalorder %s182, %s184
      %p188 = scmp.eq.s32.totalorder %s22, 0
      %p189 = por %p187, %p188
      %p190 = scmp.ne.s32.totalorder %s182, %s184
      %p191 = scmp.eq.s32.totalorder %s27, 1
      %p192 = por %p190, %p191
      %p193 = scmp.ne.s32.totalorder %s184, %s185
      %p194 = scmp.eq.s32.totalorder %s27, 0
      %p195 = por %p193, %p194
      %p196 = scmp.ne.s32.totalorder %s184, %s185
      %p197 = scmp.eq.s32.totalorder %s28, 1
      %p198 = por %p196, %p197
      %p200 = scmp.ne.s32.totalorder %s185, %s199
      %p201 = scmp.eq.s32.totalorder %s28, 0
      %p202 = por %p200, %p201
      %s204 = sadd.s32 %s203, 1
      %p207 = scmp.eq.s32.totalorder %s22, 1
      %p208 = scmp.ne.s32.totalorder %s203, %s205
      %p209 = scmp.eq.s32.totalorder %s22, 0
      %p210 = por %p208, %p209
      %p211 = scmp.ne.s32.totalorder %s203, %s205
      %p212 = scmp.eq.s32.totalorder %s27, 1
      %p213 = por %p211, %p212
      %p214 = scmp.ne.s32.totalorder %s205, %s206
      %p215 = scmp.eq.s32.totalorder %s27, 0
      %p216 = por %p214, %p215
      %p217 = scmp.ne.s32.totalorder %s205, %s206
      %p218 = scmp.eq.s32.totalorder %s28, 1
      %p219 = por %p217, %p218
      %p221 = scmp.ne.s32.totalorder %s206, %s220
      %p222 = scmp.eq.s32.totalorder %s28, 0
      %p223 = por %p221, %p222
      %s225 = sadd.s32 %s224, 1
      %p228 = scmp.eq.s32.totalorder %s22, 1
      %p229 = scmp.ne.s32.totalorder %s224, %s226
      %p230 = scmp.eq.s32.totalorder %s22, 0
      %p231 = por %p229, %p230
      %p232 = scmp.ne.s32.totalorder %s224, %s226
      %p233 = scmp.eq.s32.totalorder %s27, 1
      %p234 = por %p232, %p233
      %p235 = scmp.ne.s32.totalorder %s226, %s227
      %p236 = scmp.eq.s32.totalorder %s27, 0
      %p237 = por %p235, %p236
      %p238 = scmp.ne.s32.totalorder %s226, %s227
      %p239 = scmp.eq.s32.totalorder %s28, 1
      %p240 = por %p238, %p239
      %p242 = scmp.ne.s32.totalorder %s227, %s241
      %p243 = scmp.eq.s32.totalorder %s28, 0
      %p244 = por %p242, %p243
      %s246 = sadd.s32 %s245, 1
      %p249 = scmp.eq.s32.totalorder %s22, 1
      %p250 = scmp.ne.s32.totalorder %s245, %s247
      %p251 = scmp.eq.s32.totalorder %s22, 0
      %p252 = por %p250, %p251
      %p253 = scmp.ne.s32.totalorder %s245, %s247
      %p254 = scmp.eq.s32.totalorder %s27, 1
      %p255 = por %p253, %p254
      %p256 = scmp.ne.s32.totalorder %s247, %s248
      %p257 = scmp.eq.s32.totalorder %s27, 0
      %p258 = por %p256, %p257
      %p259 = scmp.ne.s32.totalorder %s247, %s248
      %p260 = scmp.eq.s32.totalorder %s28, 1
      %p261 = por %p259, %p260
      %p263 = scmp.ne.s32.totalorder %s248, %s262
      %p264 = scmp.eq.s32.totalorder %s28, 0
      %p265 = por %p263, %p264
      %s267 = sadd.s32 %s266, 1
      %p270 = scmp.eq.s32.totalorder %s22, 1
      %p271 = scmp.ne.s32.totalorder %s266, %s268
      %p272 = scmp.eq.s32.totalorder %s22, 0
      %p273 = por %p271, %p272
      %p274 = scmp.ne.s32.totalorder %s266, %s268
      %p275 = scmp.eq.s32.totalorder %s27, 1
      %p276 = por %p274, %p275
      %p277 = scmp.ne.s32.totalorder %s268, %s269
      %p278 = scmp.eq.s32.totalorder %s27, 0
      %p279 = por %p277, %p278
      %p280 = scmp.ne.s32.totalorder %s268, %s269
      %p281 = scmp.eq.s32.totalorder %s28, 1
      %p282 = por %p280, %p281
      %p284 = scmp.ne.s32.totalorder %s269, %s283
      %p285 = scmp.eq.s32.totalorder %s28, 0
      %p286 = por %p284, %p285
      %s288 = sadd.s32 %s287, 1
      %p291 = scmp.eq.s32.totalorder %s22, 1
      %p292 = scmp.ne.s32.totalorder %s287, %s289
      %p293 = scmp.eq.s32.totalorder %s22, 0
      %p294 = por %p292, %p293
      %p295 = scmp.ne.s32.totalorder %s287, %s289
      %p296 = scmp.eq.s32.totalorder %s27, 1
      %p297 = por %p295, %p296
      %p298 = scmp.ne.s32.totalorder %s289, %s290
      %p299 = scmp.eq.s32.totalorder %s27, 0
      %p300 = por %p298, %p299
      %p301 = scmp.ne.s32.totalorder %s289, %s290
      %p302 = scmp.eq.s32.totalorder %s28, 1
      %p303 = por %p301, %p302
      %p305 = scmp.ne.s32.totalorder %s290, %s304
      %p306 = scmp.eq.s32.totalorder %s28, 0
      %p307 = por %p305, %p306
      %s308 = ssub.s32 %s22, %s29
      %p309 = scmp.eq.s32.totalorder %s308, 0
      %s311 = sadd.s32 %s310, 1
      %s312 = scalar_select %p309, %s310, %s311
      %p315 = pneg %p309
      %p316 = scmp.eq.s32.totalorder %s22, 1
      %p317 = por %p315, %p316
      %p318 = scmp.ne.s32.totalorder %s310, %s313
      %p319 = scmp.eq.s32.totalorder %s22, 0
      %p320 = por %p318, %p319
      %p321 = scmp.ne.s32.totalorder %s310, %s313
      %p322 = scmp.eq.s32.totalorder %s27, 1
      %p323 = por %p321, %p322
      %p324 = scmp.ne.s32.totalorder %s313, %s314
      %p325 = scmp.eq.s32.totalorder %s27, 0
      %p326 = por %p324, %p325
      %p327 = scmp.ne.s32.totalorder %s313, %s314
      %p328 = scmp.eq.s32.totalorder %s28, 1
      %p329 = por %p327, %p328
      %p331 = scmp.ne.s32.totalorder %s314, %s330
      %p332 = scmp.eq.s32.totalorder %s28, 0
      %p333 = por %p331, %p332
      %p334 = scmp.le.s32.totalorder 1, %s22
      %p335 = scmp.lt.s32.totalorder %s22, 3
      %p336 = pnand %p334, %p335
      %p337 = pneg %p336
      // Predicated region
      $region9: #{baseline_block.1} parent=5 // pred_check
        _
      $region10: #{baseline_block.1} parent=5 // pred_check_branch
        %339 = sbr.rel (%p336) target = $region12
      $region11: #{baseline_block.1} parent=5 // pred_region
        %s340 = ssub.s32 %s22, 1
        // Predicated region
        $region13: #{baseline_block.1} parent=11 // pred_check
          %p341 = pneg %p69
        $region14: #{baseline_block.1} parent=11 // pred_check_branch
          %343 = sbr.rel (%p341) target = $region16
        $region15: #{baseline_block.1} parent=11 // pred_region
          _
        $region16: #{baseline_block.1} parent=11 // pred_fallthru
          _
        // Predicated region
        $region17: #{baseline_block.1} parent=11 // pred_check
          %p344 = pneg %p90
        $region18: #{baseline_block.1} parent=11 // pred_check_branch
          %346 = sbr.rel (%p344) target = $region20
        $region19: #{baseline_block.1} parent=11 // pred_region
          _
        $region20: #{baseline_block.1} parent=11 // pred_fallthru
          _
        // Predicated region
        $region21: #{baseline_block.1} parent=11 // pred_check
          %p347 = pneg %p111
        $region22: #{baseline_block.1} parent=11 // pred_check_branch
          %349 = sbr.rel (%p347) target = $region24
        $region23: #{baseline_block.1} parent=11 // pred_region
          _
        $region24: #{baseline_block.1} parent=11 // pred_fallthru
          _
        // Predicated region
        $region25: #{baseline_block.1} parent=11 // pred_check
          %p350 = pneg %p132
        $region26: #{baseline_block.1} parent=11 // pred_check_branch
          %352 = sbr.rel (%p350) target = $region28
        $region27: #{baseline_block.1} parent=11 // pred_region
          _
        $region28: #{baseline_block.1} parent=11 // pred_fallthru
          _
        // Predicated region
        $region29: #{baseline_block.1} parent=11 // pred_check
          %p353 = pneg %p153
        $region30: #{baseline_block.1} parent=11 // pred_check_branch
          %355 = sbr.rel (%p353) target = $region32
        $region31: #{baseline_block.1} parent=11 // pred_region
          _
        $region32: #{baseline_block.1} parent=11 // pred_fallthru
          _
        // Predicated region
        $region33: #{baseline_block.1} parent=11 // pred_check
          %p356 = pneg %p174
        $region34: #{baseline_block.1} parent=11 // pred_check_branch
          %358 = sbr.rel (%p356) target = $region36
        $region35: #{baseline_block.1} parent=11 // pred_region
          _
        $region36: #{baseline_block.1} parent=11 // pred_fallthru
          _
        // Predicated region
        $region37: #{baseline_block.1} parent=11 // pred_check
          %p359 = pneg %p195
        $region38: #{baseline_block.1} parent=11 // pred_check_branch
          %361 = sbr.rel (%p359) target = $region40
        $region39: #{baseline_block.1} parent=11 // pred_region
          _
        $region40: #{baseline_block.1} parent=11 // pred_fallthru
          _
        // Predicated region
        $region41: #{baseline_block.1} parent=11 // pred_check
          %p362 = pneg %p216
        $region42: #{baseline_block.1} parent=11 // pred_check_branch
          %364 = sbr.rel (%p362) target = $region44
        $region43: #{baseline_block.1} parent=11 // pred_region
          _
        $region44: #{baseline_block.1} parent=11 // pred_fallthru
          _
        // Predicated region
        $region45: #{baseline_block.1} parent=11 // pred_check
          %p365 = pneg %p237
        $region46: #{baseline_block.1} parent=11 // pred_check_branch
          %367 = sbr.rel (%p365) target = $region48
        $region47: #{baseline_block.1} parent=11 // pred_region
          _
        $region48: #{baseline_block.1} parent=11 // pred_fallthru
          _
        // Predicated region
        $region49: #{baseline_block.1} parent=11 // pred_check
          %p368 = pneg %p258
        $region50: #{baseline_block.1} parent=11 // pred_check_branch
          %370 = sbr.rel (%p368) target = $region52
        $region51: #{baseline_block.1} parent=11 // pred_region
          _
        $region52: #{baseline_block.1} parent=11 // pred_fallthru
          _
        // Predicated region
        $region53: #{baseline_block.1} parent=11 // pred_check
          %p371 = pneg %p279
        $region54: #{baseline_block.1} parent=11 // pred_check_branch
          %373 = sbr.rel (%p371) target = $region56
        $region55: #{baseline_block.1} parent=11 // pred_region
          _
        $region56: #{baseline_block.1} parent=11 // pred_fallthru
          _
        // Predicated region
        $region57: #{baseline_block.1} parent=11 // pred_check
          %p374 = pneg %p300
        $region58: #{baseline_block.1} parent=11 // pred_check_branch
          %376 = sbr.rel (%p374) target = $region60
        $region59: #{baseline_block.1} parent=11 // pred_region
          _
        $region60: #{baseline_block.1} parent=11 // pred_fallthru
          _
      $region12: #{baseline_block.1} parent=5 // pred_fallthru
        _
      %p377 = scmp.lt.s32.totalorder %s22, 2
      // Predicated region
      $region61: #{baseline_block.1} parent=5 // pred_check
        %p378 = pneg %p377
      $region62: #{baseline_block.1} parent=5 // pred_check_branch
        %380 = sbr.rel (%p378) target = $region64
      $region63: #{baseline_block.1} parent=5 // pred_region
        // Predicated region
        $region65: #{baseline_block.1} parent=63 // pred_check
          %p381 = pneg %p42
        $region66: #{baseline_block.1} parent=63 // pred_check_branch
          %383 = sbr.rel (%p381) target = $region68
        $region67: #{baseline_block.1} parent=63 // pred_region
          %p384 = scmp.lt.s32.totalorder %s22, 1
          %s385 = scalar_select %p384, %s22, 1
          %s386 = smul.addr %s385, 8
          %s387 = scalar_lea.vmem %s0, %s386
        $region68: #{baseline_block.1} parent=63 // pred_fallthru
          _
      $region64: #{baseline_block.1} parent=5 // pred_fallthru
        _
      %p388 = scmp.le.s32.totalorder 1, %s22
      %p389 = scmp.lt.s32.totalorder %s22, 3
      %p390 = pnand %p388, %p389
      %p391 = pneg %p390
      // Predicated region
      $region69: #{baseline_block.1} parent=5 // pred_check
        _
      $region70: #{baseline_block.1} parent=5 // pred_check_branch
        %393 = sbr.rel (%p390) target = $region72
      $region71: #{baseline_block.1} parent=5 // pred_region
        %s394 = ssub.s32 %s22, 1
        %p395 = scmp.lt.s32.totalorder %s27, 1
        %s396 = scalar_select %p395, %s27, 1
        %s397 = smul.addr %s396, 8
        %s398 = scalar_lea.vmem %s0, %s397
        %p399 = pneg %p48
        %p400 = pneg %p45
        %p401 = pneg %p69
        %p402 = pneg %p66
        %p403 = pneg %p90
        %p404 = pneg %p87
        %p405 = pneg %p111
        %p406 = pneg %p108
        %p407 = pneg %p132
        %p408 = pneg %p129
        %p409 = pneg %p153
        %p410 = pneg %p150
        %p411 = pneg %p174
        %p412 = pneg %p171
        %p413 = pneg %p195
        %p414 = pneg %p192
        %p415 = pneg %p216
        %p416 = pneg %p213
        %p417 = pneg %p237
        %p418 = pneg %p234
        %p419 = pneg %p258
        %p420 = pneg %p255
        %p421 = pneg %p279
        %p422 = pneg %p276
        %p423 = pneg %p300
        %p424 = pneg %p297
        %p425 = pneg %p326
        %p426 = pneg %p323
        %s427 = sand.u32 %s313, 1
        %s428 = scalar_lea.sflag [#allocation3], %s427
        %s429 = sand.u32 %s313, 1
        %s430 = smul.addr %s429, 8
        %s431 = scalar_lea.vmem [#allocation2], %s430
        %p432 = scmp.lt.s32.totalorder %s27, 1
        %s433 = scalar_select %p432, %s27, 1
        %s434 = smul.addr %s433, 8
        %s435 = scalar_lea.vmem %s0, %s434
        %v436 = vld [vmem:[%s435] sm:$0xff]
        %v437 = vld [vmem:[%s1] sm:$0x1]
        %v438 = vld [vmem:[%s2] sm:$0x1]
        %vm439 = vcmask 261120
        %v440 = vsel %vm439, %v436, 0.0
        %441 = vadd.xlane.f32.xlu0 %v440
        %v442 = vpop.xlane.xlu0 %441
        %v443 = vrcp.pop 32.0
        %v444 = vmul.f32 %v442, %v443
        %v445 = vmul.f32 %v436, %v436
        %v446 = vsel %vm439, %v445, 0.0
        %447 = vadd.xlane.f32.xlu0 %v446
        %v448 = vpop.xlane.xlu0 %447
        %v449 = vmul.f32 %v448, %v443
        %v450 = vmul.f32 %v444, %v444
        %v451 = vsub.f32 %v449, %v450
        %v452 = vmax.f32 %v451, 0.0
        %v453 = vsub.f32 %v436, %v444
        %v454 = vadd.f32 %v452, 1e-05
        %v455 = vrsqrt.pop %v454
        %v456 = vmul.f32 %v453, %v455
        %v458 = vlaneseq
        %v459 = vshrl.u32 %v458, 7
        %v460 = vsub.s32 0, %v459
        %v461 = vrot.slane %v437, %v460
        %v463 = vmul.f32 %v456, %v461
        %v465 = vlaneseq
        %v466 = vshrl.u32 %v465, 7
        %v467 = vsub.s32 0, %v466
        %v468 = vrot.slane %v438, %v467
        %v470 = vadd.f32 %v463, %v468
        %v471 = vld [vmem:[%s3] sm:$0xff]
        %v472 = vld [vmem:[%s3 + $0x8] sm:$0xff]
        %v473 = vld [vmem:[%s3 + $0x10] sm:$0xff]
        %v474 = vld [vmem:[%s3 + $0x18] sm:$0xff]
        %v475 = vld [vmem:[%s4] sm:$0x1]
        %v477 = vlaneseq
        %v478 = vshrl.u32 %v477, 7
        %v479 = vsub.s32 0, %v478
        %v480 = vrot.slane %v475, %v479
        %v483 = vsel %vm439, %v470, 0
        %485 = vmatprep.subr.mxu0 0.0
        %486 = vmatpush1.msra.mxu0 %v471
        %487 = vmatprep.subr.mxu0 0.0
        %488 = vmatpush1.msra.mxu0 %v472
        %489 = vmatprep.subr.mxu0 0.0
        %490 = vmatpush1.msra.mxu0 %v473
        %491 = vmatprep.subr.mxu0 0.0
        %492 = vmatpush1.msra.mxu0 %v474
        %493 = vmatprep.subr.mxu0 0.0
        %494 = vmatpush1.msra.mxu0 0.0
        %495 = vmatprep.subr.mxu0 0.0
        %496 = vmatpush1.msra.mxu0 0.0
        %497 = vmatprep.subr.mxu0 0.0
        %498 = vmatpush1.msra.mxu0 0.0
        %499 = vmatprep.subr.mxu0 0.0
        %500 = vmatpush1.msra.mxu0 0.0
        %501 = vmatprep.subr.mxu0 0.0
        %502 = vmatpush1.msra.mxu0 0.0
        %503 = vmatprep.subr.mxu0 0.0
        %504 = vmatpush1.msra.mxu0 0.0
        %505 = vmatprep.subr.mxu0 0.0
        %506 = vmatpush1.msra.mxu0 0.0
        %507 = vmatprep.subr.mxu0 0.0
        %508 = vmatpush1.msra.mxu0 0.0
        %509 = vmatprep.subr.mxu0 0.0
        %510 = vmatpush1.msra.mxu0 0.0
        %511 = vmatprep.subr.mxu0 0.0
        %512 = vmatpush1.msra.mxu0 0.0
        %513 = vmatprep.subr.mxu0 0.0
        %514 = vmatpush1.msra.mxu0 0.0
        %515 = vmatprep.subr.mxu0 0.0
        %516 = vmatpush1.msra.mxu0 0.0
        %517 = vmatprep.subr.mxu0 0.0
        %518 = vmatpush1.msra.mxu0 0.0
        %519 = vmatprep.subr.mxu0 0.0
        %520 = vmatpush1.msra.mxu0 0.0
        %521 = vmatprep.subr.mxu0 0.0
        %522 = vmatpush1.msra.mxu0 0.0
        %523 = vmatprep.subr.mxu0 0.0
        %524 = vmatpush1.msra.mxu0 0.0
        %525 = vmatprep.subr.mxu0 0.0
        %526 = vmatpush1.msra.mxu0 0.0
        %527 = vmatprep.subr.mxu0 0.0
        %528 = vmatpush1.msra.mxu0 0.0
        %529 = vmatprep.subr.mxu0 0.0
        %530 = vmatpush1.msra.mxu0 0.0
        %531 = vmatprep.subr.mxu0 0.0
        %532 = vmatpush1.msra.mxu0 0.0
        %533 = vmatprep.subr.mxu0 0.0
        %534 = vmatpush1.msra.mxu0 0.0
        %535 = vmatprep.subr.mxu0 0.0
        %536 = vmatpush1.msra.mxu0 0.0
        %537 = vmatprep.subr.mxu0 0.0
        %538 = vmatpush1.msra.mxu0 0.0
        %539 = vmatprep.subr.mxu0 0.0
        %540 = vmatpush1.msra.mxu0 0.0
        %541 = vmatprep.subr.mxu0 0.0
        %542 = vmatpush1.msra.mxu0 0.0
        %543 = vmatprep.subr.mxu0 0.0
        %544 = vmatpush1.msra.mxu0 0.0
        %545 = vmatprep.subr.mxu0 0.0
        %546 = vmatpush1.msra.mxu0 0.0
        %547 = vmatprep.subr.mxu0 0.0
        %548 = vmatpush1.msra.mxu0 0.0
        %549 = vmatprep.mubr.f32.mxu0 0.0
        %550 = vmatmul.mubr.f32.gmra.mrb[0].mxu0 %v483
        %v551 = vpop.f32.mrb[0].mxu0
        %v552 = vadd.f32 %v480, %v551
        %v553 = vpop.f32.mrb[0].mxu0
        %554 = vdwg.mxu0
        %v555 = vmul.f32 %v552, 0.5
        %v556 = vmul.f32 %v552, %v552
        %v557 = vmul.f32 %v556, %v552
        %v558 = vmul.f32 %v557, 0.044715
        %v559 = vadd.f32 %v552, %v558
        %v560 = vmul.f32 %v559, 0.7978846
        %v561 = vtanh.pop %v560
        %v562 = vadd.f32 %v561, 1.0
        %v563 = vmul.f32 %v555, %v562
        %v564 = vld [vmem:[%s5] sm:$0xff]
        %v565 = vld [vmem:[%s5 + $0x8] sm:$0xff]
        %v566 = vld [vmem:[%s5 + $0x10] sm:$0xff]
        %v567 = vld [vmem:[%s5 + $0x18] sm:$0xff]
        %v568 = vld [vmem:[%s5 + $0x20] sm:$0xff]
        %v569 = vld [vmem:[%s5 + $0x28] sm:$0xff]
        %v570 = vld [vmem:[%s5 + $0x30] sm:$0xff]
        %v571 = vld [vmem:[%s5 + $0x38] sm:$0xff]
        %v572 = vld [vmem:[%s5 + $0x40] sm:$0xff]
        %v573 = vld [vmem:[%s5 + $0x48] sm:$0xff]
        %v574 = vld [vmem:[%s5 + $0x50] sm:$0xff]
        %v575 = vld [vmem:[%s5 + $0x58] sm:$0xff]
        %v576 = vld [vmem:[%s6] sm:$0x1]
        %v578 = vlaneseq
        %v579 = vshrl.u32 %v578, 7
        %v580 = vsub.s32 0, %v579
        %v581 = vrot.slane %v576, %v580
        %vm583 = vcmask 785408
        %v585 = vsel %vm583, %v563, 0
        %587 = vmatprep.subr.mxu0 0.0
        %588 = vmatpush1.msra.mxu0 %v564
        %589 = vmatprep.subr.mxu0 0.0
        %590 = vmatpush1.msra.mxu0 %v565
        %591 = vmatprep.subr.mxu0 0.0
        %592 = vmatpush1.msra.mxu0 %v566
        %593 = vmatprep.subr.mxu0 0.0
        %594 = vmatpush1.msra.mxu0 %v567
        %595 = vmatprep.subr.mxu0 0.0
        %596 = vmatpush1.msra.mxu0 %v568
        %597 = vmatprep.subr.mxu0 0.0
        %598 = vmatpush1.msra.mxu0 %v569
        %599 = vmatprep.subr.mxu0 0.0
        %600 = vmatpush1.msra.mxu0 %v570
        %601 = vmatprep.subr.mxu0 0.0
        %602 = vmatpush1.msra.mxu0 %v571
        %603 = vmatprep.subr.mxu0 0.0
        %604 = vmatpush1.msra.mxu0 %v572
        %605 = vmatprep.subr.mxu0 0.0
        %606 = vmatpush1.msra.mxu0 %v573
        %607 = vmatprep.subr.mxu0 0.0
        %608 = vmatpush1.msra.mxu0 %v574
        %609 = vmatprep.subr.mxu0 0.0
        %610 = vmatpush1.msra.mxu0 %v575
        %611 = vmatprep.subr.mxu0 0.0
        %612 = vmatpush1.msra.mxu0 0.0
        %613 = vmatprep.subr.mxu0 0.0
        %614 = vmatpush1.msra.mxu0 0.0
        %615 = vmatprep.subr.mxu0 0.0
        %616 = vmatpush1.msra.mxu0 0.0
        %617 = vmatprep.subr.mxu0 0.0
        %618 = vmatpush1.msra.mxu0 0.0
        %619 = vmatprep.subr.mxu0 0.0
        %620 = vmatpush1.msra.mxu0 0.0
        %621 = vmatprep.subr.mxu0 0.0
        %622 = vmatpush1.msra.mxu0 0.0
        %623 = vmatprep.subr.mxu0 0.0
        %624 = vmatpush1.msra.mxu0 0.0
        %625 = vmatprep.subr.mxu0 0.0
        %626 = vmatpush1.msra.mxu0 0.0
        %627 = vmatprep.subr.mxu0 0.0
        %628 = vmatpush1.msra.mxu0 0.0
        %629 = vmatprep.subr.mxu0 0.0
        %630 = vmatpush1.msra.mxu0 0.0
        %631 = vmatprep.subr.mxu0 0.0
        %632 = vmatpush1.msra.mxu0 0.0
        %633 = vmatprep.subr.mxu0 0.0
        %634 = vmatpush1.msra.mxu0 0.0
        %635 = vmatprep.subr.mxu0 0.0
        %636 = vmatpush1.msra.mxu0 0.0
        %637 = vmatprep.subr.mxu0 0.0
        %638 = vmatpush1.msra.mxu0 0.0
        %639 = vmatprep.subr.mxu0 0.0
        %640 = vmatpush1.msra.mxu0 0.0
        %641 = vmatprep.subr.mxu0 0.0
        %642 = vmatpush1.msra.mxu0 0.0
        %643 = vmatprep.subr.mxu0 0.0
        %644 = vmatpush1.msra.mxu0 0.0
        %645 = vmatprep.subr.mxu0 0.0
        %646 = vmatpush1.msra.mxu0 0.0
        %647 = vmatprep.subr.mxu0 0.0
        %648 = vmatpush1.msra.mxu0 0.0
        %649 = vmatprep.subr.mxu0 0.0
        %650 = vmatpush1.msra.mxu0 0.0
        %651 = vmatprep.mubr.f32.mxu0 0.0
        %652 = vmatmul.mubr.f32.gmra.mrb[0].mxu0 %v585
        %v653 = vpop.f32.mrb[0].mxu0
        %v654 = vadd.f32 %v581, %v653
        %v655 = vpop.f32.mrb[0].mxu0
        %656 = vdwg.mxu0
        %v657 = vadd.f32 %v436, %v654
        %v658 = vld [vmem:[%s7] sm:$0x1]
        %v659 = vld [vmem:[%s8] sm:$0x1]
        %v660 = vsel %vm439, %v657, 0.0
        %661 = vadd.xlane.f32.xlu0 %v660
        %v662 = vpop.xlane.xlu0 %661
        %v663 = vmul.f32 %v662, %v443
        %v664 = vmul.f32 %v657, %v657
        %v665 = vsel %vm439, %v664, 0.0
        %666 = vadd.xlane.f32.xlu0 %v665
        %v667 = vpop.xlane.xlu0 %666
        %v668 = vmul.f32 %v667, %v443
        %v669 = vmul.f32 %v663, %v663
        %v670 = vsub.f32 %v668, %v669
        %v671 = vmax.f32 %v670, 0.0
        %v672 = vsub.f32 %v657, %v663
        %v673 = vadd.f32 %v671, 1e-05
        %v674 = vrsqrt.pop %v673
        %v675 = vmul.f32 %v672, %v674
        %v677 = vlaneseq
        %v678 = vshrl.u32 %v677, 7
        %v679 = vsub.s32 0, %v678
        %v680 = vrot.slane %v658, %v679
        %v682 = vmul.f32 %v675, %v680
        %v684 = vlaneseq
        %v685 = vshrl.u32 %v684, 7
        %v686 = vsub.s32 0, %v685
        %v687 = vrot.slane %v659, %v686
        %v689 = vadd.f32 %v682, %v687
        %v690 = vld [vmem:[%s9] sm:$0xff]
        %v691 = vld [vmem:[%s9 + $0x8] sm:$0xff]
        %v692 = vld [vmem:[%s9 + $0x10] sm:$0xff]
        %v693 = vld [vmem:[%s9 + $0x18] sm:$0xff]
        %v694 = vld [vmem:[%s10] sm:$0x1]
        %v696 = vlaneseq
        %v697 = vshrl.u32 %v696, 7
        %v698 = vsub.s32 0, %v697
        %v699 = vrot.slane %v694, %v698
        %v702 = vsel %vm439, %v689, 0
        %704 = vmatprep.subr.mxu0 0.0
        %705 = vmatpush1.msra.mxu0 %v690
        %706 = vmatprep.subr.mxu0 0.0
        %707 = vmatpush1.msra.mxu0 %v691
        %708 = vmatprep.subr.mxu0 0.0
        %709 = vmatpush1.msra.mxu0 %v692
        %710 = vmatprep.subr.mxu0 0.0
        %711 = vmatpush1.msra.mxu0 %v693
        %712 = vmatprep.subr.mxu0 0.0
        %713 = vmatpush1.msra.mxu0 0.0
        %714 = vmatprep.subr.mxu0 0.0
        %715 = vmatpush1.msra.mxu0 0.0
        %716 = vmatprep.subr.mxu0 0.0
        %717 = vmatpush1.msra.mxu0 0.0
        %718 = vmatprep.subr.mxu0 0.0
        %719 = vmatpush1.msra.mxu0 0.0
        %720 = vmatprep.subr.mxu0 0.0
        %721 = vmatpush1.msra.mxu0 0.0
        %722 = vmatprep.subr.mxu0 0.0
        %723 = vmatpush1.msra.mxu0 0.0
        %724 = vmatprep.subr.mxu0 0.0
        %725 = vmatpush1.msra.mxu0 0.0
        %726 = vmatprep.subr.mxu0 0.0
        %727 = vmatpush1.msra.mxu0 0.0
        %728 = vmatprep.subr.mxu0 0.0
        %729 = vmatpush1.msra.mxu0 0.0
        %730 = vmatprep.subr.mxu0 0.0
        %731 = vmatpush1.msra.mxu0 0.0
        %732 = vmatprep.subr.mxu0 0.0
        %733 = vmatpush1.msra.mxu0 0.0
        %734 = vmatprep.subr.mxu0 0.0
        %735 = vmatpush1.msra.mxu0 0.0
        %736 = vmatprep.subr.mxu0 0.0
        %737 = vmatpush1.msra.mxu0 0.0
        %738 = vmatprep.subr.mxu0 0.0
        %739 = vmatpush1.msra.mxu0 0.0
        %740 = vmatprep.subr.mxu0 0.0
        %741 = vmatpush1.msra.mxu0 0.0
        %742 = vmatprep.subr.mxu0 0.0
        %743 = vmatpush1.msra.mxu0 0.0
        %744 = vmatprep.subr.mxu0 0.0
        %745 = vmatpush1.msra.mxu0 0.0
        %746 = vmatprep.subr.mxu0 0.0
        %747 = vmatpush1.msra.mxu0 0.0
        %748 = vmatprep.subr.mxu0 0.0
        %749 = vmatpush1.msra.mxu0 0.0
        %750 = vmatprep.subr.mxu0 0.0
        %751 = vmatpush1.msra.mxu0 0.0
        %752 = vmatprep.subr.mxu0 0.0
        %753 = vmatpush1.msra.mxu0 0.0
        %754 = vmatprep.subr.mxu0 0.0
        %755 = vmatpush1.msra.mxu0 0.0
        %756 = vmatprep.subr.mxu0 0.0
        %757 = vmatpush1.msra.mxu0 0.0
        %758 = vmatprep.subr.mxu0 0.0
        %759 = vmatpush1.msra.mxu0 0.0
        %760 = vmatprep.subr.mxu0 0.0
        %761 = vmatpush1.msra.mxu0 0.0
        %762 = vmatprep.subr.mxu0 0.0
        %763 = vmatpush1.msra.mxu0 0.0
        %764 = vmatprep.subr.mxu0 0.0
        %765 = vmatpush1.msra.mxu0 0.0
        %766 = vmatprep.subr.mxu0 0.0
        %767 = vmatpush1.msra.mxu0 0.0
        %768 = vmatprep.mubr.f32.mxu0 0.0
        %769 = vmatmul.mubr.f32.gmra.mrb[0].mxu0 %v702
        %v770 = vpop.f32.mrb[0].mxu0
        %v771 = vadd.f32 %v699, %v770
        %v772 = vpop.f32.mrb[0].mxu0
        %773 = vdwg.mxu0
        %v774 = vmul.f32 %v771, 0.5
        %v775 = vmul.f32 %v771, %v771
        %v776 = vmul.f32 %v775, %v771
        %v777 = vmul.f32 %v776, 0.044715
        %v778 = vadd.f32 %v771, %v777
        %v779 = vmul.f32 %v778, 0.7978846
        %v780 = vtanh.pop %v779
        %v781 = vadd.f32 %v780, 1.0
        %v782 = vmul.f32 %v774, %v781
        %v783 = vld [vmem:[%s11] sm:$0xff]
        %v784 = vld [vmem:[%s11 + $0x8] sm:$0xff]
        %v785 = vld [vmem:[%s11 + $0x10] sm:$0xff]
        %v786 = vld [vmem:[%s11 + $0x18] sm:$0xff]
        %v787 = vld [vmem:[%s11 + $0x20] sm:$0xff]
        %v788 = vld [vmem:[%s11 + $0x28] sm:$0xff]
        %v789 = vld [vmem:[%s11 + $0x30] sm:$0xff]
        %v790 = vld [vmem:[%s11 + $0x38] sm:$0xff]
        %v791 = vld [vmem:[%s11 + $0x40] sm:$0xff]
        %v792 = vld [vmem:[%s11 + $0x48] sm:$0xff]
        %v793 = vld [vmem:[%s11 + $0x50] sm:$0xff]
        %v794 = vld [vmem:[%s11 + $0x58] sm:$0xff]
        %v795 = vld [vmem:[%s11 + $0x60] sm:$0xff]
        %v796 = vld [vmem:[%s11 + $0x68] sm:$0xff]
        %v797 = vld [vmem:[%s11 + $0x70] sm:$0xff]
        %v798 = vld [vmem:[%s11 + $0x78] sm:$0xff]
        %v799 = vld [vmem:[%s12] sm:$0x1]
        %v801 = vlaneseq
        %v802 = vshrl.u32 %v801, 7
        %v803 = vsub.s32 0, %v802
        %v804 = vrot.slane %v799, %v803
        %806 = vmatprep.subr.mxu0 0.0
        %807 = vmatpush1.msra.mxu0 %v783
        %808 = vmatprep.subr.mxu0 0.0
        %809 = vmatpush1.msra.mxu0 %v784
        %810 = vmatprep.subr.mxu0 0.0
        %811 = vmatpush1.msra.mxu0 %v785
        %812 = vmatprep.subr.mxu0 0.0
        %813 = vmatpush1.msra.mxu0 %v786
        %814 = vmatprep.subr.mxu0 0.0
        %815 = vmatpush1.msra.mxu0 %v787
        %816 = vmatprep.subr.mxu0 0.0
        %817 = vmatpush1.msra.mxu0 %v788
        %818 = vmatprep.subr.mxu0 0.0
        %819 = vmatpush1.msra.mxu0 %v789
        %820 = vmatprep.subr.mxu0 0.0
        %821 = vmatpush1.msra.mxu0 %v790
        %822 = vmatprep.subr.mxu0 0.0
        %823 = vmatpush1.msra.mxu0 %v791
        %824 = vmatprep.subr.mxu0 0.0
        %825 = vmatpush1.msra.mxu0 %v792
        %826 = vmatprep.subr.mxu0 0.0
        %827 = vmatpush1.msra.mxu0 %v793
        %828 = vmatprep.subr.mxu0 0.0
        %829 = vmatpush1.msra.mxu0 %v794
        %830 = vmatprep.subr.mxu0 0.0
        %831 = vmatpush1.msra.mxu0 %v795
        %832 = vmatprep.subr.mxu0 0.0
        %833 = vmatpush1.msra.mxu0 %v796
        %834 = vmatprep.subr.mxu0 0.0
        %835 = vmatpush1.msra.mxu0 %v797
        %836 = vmatprep.subr.mxu0 0.0
        %837 = vmatpush1.msra.mxu0 %v798
        %838 = vmatprep.subr.mxu0 0.0
        %839 = vmatpush1.msra.mxu0 0.0
        %840 = vmatprep.subr.mxu0 0.0
        %841 = vmatpush1.msra.mxu0 0.0
        %842 = vmatprep.subr.mxu0 0.0
        %843 = vmatpush1.msra.mxu0 0.0
        %844 = vmatprep.subr.mxu0 0.0
        %845 = vmatpush1.msra.mxu0 0.0
        %846 = vmatprep.subr.mxu0 0.0
        %847 = vmatpush1.msra.mxu0 0.0
        %848 = vmatprep.subr.mxu0 0.0
        %849 = vmatpush1.msra.mxu0 0.0
        %850 = vmatprep.subr.mxu0 0.0
        %851 = vmatpush1.msra.mxu0 0.0
        %852 = vmatprep.subr.mxu0 0.0
        %853 = vmatpush1.msra.mxu0 0.0
        %854 = vmatprep.subr.mxu0 0.0
        %855 = vmatpush1.msra.mxu0 0.0
        %856 = vmatprep.subr.mxu0 0.0
        %857 = vmatpush1.msra.mxu0 0.0
        %858 = vmatprep.subr.mxu0 0.0
        %859 = vmatpush1.msra.mxu0 0.0
        %860 = vmatprep.subr.mxu0 0.0
        %861 = vmatpush1.msra.mxu0 0.0
        %862 = vmatprep.subr.mxu0 0.0
        %863 = vmatpush1.msra.mxu0 0.0
        %864 = vmatprep.subr.mxu0 0.0
        %865 = vmatpush1.msra.mxu0 0.0
        %866 = vmatprep.subr.mxu0 0.0
        %867 = vmatpush1.msra.mxu0 0.0
        %868 = vmatprep.subr.mxu0 0.0
        %869 = vmatpush1.msra.mxu0 0.0
        %870 = vmatprep.mubr.f32.mxu0 0.0
        %871 = vmatmul.mubr.f32.gmra.mrb[0].mxu0 %v782
        %v872 = vpop.f32.mrb[0].mxu0
        %v873 = vadd.f32 %v804, %v872
        %v874 = vpop.f32.mrb[0].mxu0
        %875 = vdwg.mxu0
        %v876 = vadd.f32 %v657, %v873
        %877 = vst.msk [vmem:[%s431] sm:$0xff] %vm439, %v876
        %s878 = sand.u32 %s313, 1
        %s879 = scalar_lea.sflag [#allocation3], %s878
        %s880 = sand.u32 %s313, 1
        %s881 = smul.addr %s880, 8
        %s882 = scalar_lea.vmem [#allocation2], %s881
        // Predicated region
        $region73: #{baseline_block.1} parent=71 // pred_check
          %p883 = pneg %p323
        $region74: #{baseline_block.1} parent=71 // pred_check_branch
          %885 = sbr.rel (%p883) target = $region76
        $region75: #{baseline_block.1} parent=71 // pred_region
          %s887 = ssub.s32 128, 128
          %888 = vsyncadd %s879, %s887
          %s889 = smul.addr %s27, 128
          %s890 = scalar_lea.hbm %s13, %s889
          %s892 = sshll.u32 %s882, 4
          %s893 = int_to_ptr.vmem [resolvable:$true] %s892
          %895 = dma.vmem_to_hbm [thread:$0]  %s893, 128, %s890, %s879
        $region76: #{baseline_block.1} parent=71 // pred_fallthru
          _
      $region72: #{baseline_block.1} parent=5 // pred_fallthru
        _
      %p896 = scmp.le.s32.totalorder 2, %s22
      // Predicated region
      $region77: #{baseline_block.1} parent=5 // pred_check
        %p897 = pneg %p896
      $region78: #{baseline_block.1} parent=5 // pred_check_branch
        %899 = sbr.rel (%p897) target = $region80
      $region79: #{baseline_block.1} parent=5 // pred_region
        %s900 = ssub.s32 %s22, 2
        // Predicated region
        $region81: #{baseline_block.1} parent=79 // pred_check
          %p901 = pneg %p329
        $region82: #{baseline_block.1} parent=79 // pred_check_branch
          %903 = sbr.rel (%p901) target = $region84
        $region83: #{baseline_block.1} parent=79 // pred_region
          %s904 = sand.u32 %s314, 1
          %s905 = scalar_lea.sflag [#allocation3], %s904
          %s906 = sand.u32 %s314, 1
          %s907 = smul.addr %s906, 8
          %s908 = scalar_lea.vmem [#allocation2], %s907
          %909 = dma.done %s905, 128
        $region84: #{baseline_block.1} parent=79 // pred_fallthru
          _
      $region80: #{baseline_block.1} parent=5 // pred_fallthru
        _
    $region6: #{baseline_block.1} parent=1 // loop_footer
      %s26 = sadd.s32 1, %s22
    $region7: #{baseline_block.1} parent=1 // loop_footer_branch
      %21 = sbr.rel target = $region3
    $region8: #{baseline_block.1} parent=1 // loop_exit
      _
    %910 = vsyncpa [#allocation3], 1
    %s911 = scalar_lea.sflag [#allocation3], 1
    %912 = vsyncpa %s911, 1

</llo_original>
